<compile_context>
chip_gen: v5e
topology: v5e:2x2
jax: 0.10.0
libtpu: 0.0.40
codegen_flags: <defaults>
</compile_context>

<pallas_src>
import jax
import jax.numpy as jnp
from jax.experimental import pallas as pl
from jax.experimental.pallas import tpu as pltpu

LANES = 128
_INPUT_VMEM_BUDGET_BYTES = 16 * 1024 * 1024   # double-buffered input working set
_VMEM_LIMIT_BYTES = 32 * 1024 * 1024          # explicit scoped-VMEM limit


def _num_tensorcores():
    """Best-effort TensorCores-per-chip (v7x: 2, v5e/v6e: 1)."""
    try:
        kind = jax.devices()[0].device_kind.lower()
    except Exception:
        return 1
    return 2 if "v7" in kind else 1


def _auto_tile_rows(x_dtype, t_dtype):
    """Rows per tile so the double-buffered inputs stay near the VMEM budget."""
    bytes_per_row = LANES * (jnp.dtype(x_dtype).itemsize + jnp.dtype(t_dtype).itemsize)
    rows = _INPUT_VMEM_BUDGET_BYTES // (2 * bytes_per_row)   # 2 = double buffering
    rows = (int(rows) // 512) * 512
    return max(512, min(rows, 16384))


def _sigmoid(x):
    # Single-EUP-op sigmoid (one tanh push instead of exp + divide).
    return 0.5 * (jnp.tanh(0.5 * x) + 1.0)


def _make_dice_kernel(rows_valid, tile_r, tiles_per_part):
    """Streaming (intersection, union) reduction closed over static sizes."""

    def kernel(x_ref, t_ref, out_ref, acc_i, acc_u):
        p = pl.program_id(0)   # partial-sum slot (one per TensorCore on v7x)
        i = pl.program_id(1)   # tile within this partial ("arbitrary" axis)

        @pl.when(i == 0)
        def _init():
            acc_i[...] = jnp.zeros_like(acc_i)
            acc_u[...] = jnp.zeros_like(acc_u)

        # Logical (unclamped) tile id / first row handled by this grid step.
        tile = p * tiles_per_part + i
        row0 = tile * tile_r

        x = x_ref[...].astype(jnp.float32)
        t = t_ref[...].astype(jnp.float32)
        s = _sigmoid(x)   # EUP hot path, 1 op/element

        is_full = row0 + tile_r <= rows_valid

        @pl.when(is_full)
        def _interior():
            acc_i[...] += jnp.sum(s * t, axis=0, keepdims=True)
            acc_u[...] += jnp.sum(s + t, axis=0, keepdims=True)

        @pl.when(jnp.logical_not(is_full))
        def _tail():
            # Kernel rows are always lane-full (the <128-element remainder is
            # handled in plain JAX), so only a row-validity mask is needed for
            # the final overrunning / duplicated tile.
            rid = jax.lax.broadcasted_iota(jnp.int32, (tile_r, 1), 0)
            m = (row0 + rid) < rows_valid
            # jnp.where (not multiply) so unspecified OOB data can't leak NaNs.
            sz = jnp.where(m, s, 0.0)
            tz = jnp.where(m, t, 0.0)
            acc_i[...] += jnp.sum(sz * tz, axis=0, keepdims=True)
            acc_u[...] += jnp.sum(sz + tz, axis=0, keepdims=True)

        @pl.when(i == tiles_per_part - 1)
        def _finalize():
            # Cross-lane reduction + scalar writes only in the epilogue.
            out_ref[0, 0] = jnp.sum(acc_i[...])
            out_ref[0, 1] = jnp.sum(acc_u[...])

    return kernel


def _reduce_aligned(x2, t2, tile_r_max=None):
    """(sum(sigmoid(x)*t), sum(sigmoid(x)) + sum(t)) over a (rows, 128) slab."""
    rows = x2.shape[0]

    auto_rows = _auto_tile_rows(x2.dtype, t2.dtype)
    cap = auto_rows if tile_r_max is None else min(int(tile_r_max), auto_rows)
    tile_r = rows if rows <= cap else cap
    num_tiles = pl.cdiv(rows, tile_r)

    n_cores = _num_tensorcores()

    def run(num_parts, leading_sem):
        tiles_per_part = pl.cdiv(num_tiles, num_parts)

        def in_map(p, i):
            # Clamp so duplicated / out-of-range tiles stay in bounds; their
            # contribution is fully masked out in the kernel.
            return (jnp.minimum(p * tiles_per_part + i, num_tiles - 1), 0)

        kernel = _make_dice_kernel(rows, tile_r, tiles_per_part)
        return pl.pallas_call(
            kernel,
            out_shape=jax.ShapeDtypeStruct((num_parts, 2), jnp.float32),
            grid_spec=pltpu.PrefetchScalarGridSpec(
                num_scalar_prefetch=0,
                grid=(num_parts, tiles_per_part),
                in_specs=[
                    pl.BlockSpec((tile_r, LANES), in_map),
                    pl.BlockSpec((tile_r, LANES), in_map),
                ],
                out_specs=pl.BlockSpec((1, 2), lambda p, i: (p, 0),
                                       memory_space=pltpu.MemorySpace.SMEM),
                scratch_shapes=[
                    pltpu.VMEM((1, LANES), jnp.float32),
                    pltpu.VMEM((1, LANES), jnp.float32),
                ],
            ),
            compiler_params=pltpu.CompilerParams(
                dimension_semantics=(leading_sem, pltpu.ARBITRARY),
                vmem_limit_bytes=_VMEM_LIMIT_BYTES),
        )(x2, t2)

    if n_cores > 1 and num_tiles >= n_cores:
        try:
            partials = run(n_cores, pltpu.CORE_PARALLEL)
        except Exception:
            # TODO(synk): drop this fallback once CORE_PARALLEL + per-part SMEM
            # output blocks is confirmed on all multi-TensorCore targets.
            partials = run(1, pltpu.ARBITRARY)
    else:
        partials = run(1, pltpu.ARBITRARY)

    sums = jnp.sum(partials, axis=0)   # combine per-core partials
    return sums[0], sums[1]


def dice_loss(model_output, target, tile_r_max=None):
    """JAX/Pallas equivalent of DiceLoss.forward(model_output, target).

    The kernel is HBM-bandwidth-bound: pass the narrowest dtypes available
    (e.g. bf16 logits, bf16/int8 binary target). The f32 upcast happens on the
    VPU inside the kernel, so halving bytes/element is a near-linear speedup.
    """
    x_flat = model_output.reshape(-1)
    t_flat = target.reshape(-1)
    n = x_flat.shape[0]
    n_aligned = (n // LANES) * LANES

    inter = jnp.float32(0.0)
    union = jnp.float32(0.0)

    if n_aligned:
        rows = n_aligned // LANES
        if n_aligned == n:
            # Common case (numel % 128 == 0): pure reshape, zero copy.
            x2 = x_flat.reshape(rows, LANES)
            t2 = t_flat.reshape(rows, LANES)
        else:
            # TODO(synk): the prefix slice may still materialize a copy of the
            # aligned region; still strictly less HBM traffic than padding both
            # full arrays as before.
            x2 = x_flat[:n_aligned].reshape(rows, LANES)
            t2 = t_flat[:n_aligned].reshape(rows, LANES)
        k_inter, k_union = _reduce_aligned(x2, t2, tile_r_max=tile_r_max)
        inter = inter + k_inter
        union = union + k_union

    if n_aligned < n:
        # <=127-element remainder: summed in plain JAX instead of padding the
        # whole array (which doubled HBM traffic on the odd-numel path).
        xt = x_flat[n_aligned:].astype(jnp.float32)
        tt = t_flat[n_aligned:].astype(jnp.float32)
        st = _sigmoid(xt)
        inter = inter + jnp.sum(st * tt)
        union = union + jnp.sum(st) + jnp.sum(tt)

    safe_union = jnp.where(union == 0, jnp.float32(1.0), union)
    dice = jnp.where(union == 0, jnp.float32(1.0), 2.0 * inter / safe_union)
    return 1.0 - dice


def dice_loss_ref(model_output, target):
    """Pure-JAX reference for validation."""
    s = jax.nn.sigmoid(model_output.astype(jnp.float32)).reshape(-1)
    t = target.astype(jnp.float32).reshape(-1)
    inter = jnp.sum(s * t)
    union = jnp.sum(s) + jnp.sum(t)
    dice = jnp.where(union == 0, 1.0,
                     2.0 * inter / jnp.where(union == 0, 1.0, union))
    return 1.0 - dice


if __name__ == "__main__":
    key = jax.random.PRNGKey(0)
    k1, k2, k3, k4 = jax.random.split(key, 4)

    # Case 1: NCHW-style logits + binary target, numel % 128 == 0
    # (zero-copy reshape, single full tile, no mask).
    x1 = jax.random.normal(k1, (2, 4, 16, 16), dtype=jnp.float32)
    t1 = (jax.random.uniform(k2, (2, 4, 16, 16)) > 0.5).astype(jnp.float32)
    out1 = jax.block_until_ready(dice_loss(x1, t1))
    ref1 = jax.block_until_ready(dice_loss_ref(x1, t1))
    assert jnp.allclose(out1, ref1, rtol=1e-4, atol=1e-5), (out1, ref1)

    # Case 2: same data with a tiny tile cap -> multi-tile grid, exercises the
    # partial-tile row mask and the partial-sum combine path.
    out2 = jax.block_until_ready(dice_loss(x1, t1, tile_r_max=8))
    assert jnp.allclose(out2, ref1, rtol=1e-4, atol=1e-5), (out2, ref1)

    # Case 3: odd numel (378) + bf16 logits -> 128-aligned prefix in the
    # kernel (bf16 streamed, f32 upcast on the VPU) + plain-JAX tail sum.
    x3 = jax.random.normal(k3, (2, 3, 7, 9), dtype=jnp.bfloat16)
    t3 = (jax.random.uniform(k4, (2, 3, 7, 9)) > 0.5).astype(jnp.float32)
    out3 = jax.block_until_ready(dice_loss(x3, t3))
    ref3 = jax.block_until_ready(dice_loss_ref(x3, t3))
    assert jnp.allclose(out3, ref3, rtol=1e-4, atol=1e-5), (out3, ref3)

    print("KERNEL_OK")
</pallas_src>

<mosaic_0001>
module attributes {stable_mosaic.version = 11 : i64} {
  func.func @kernel(%arg0: i32, %arg1: i32, %arg2: memref<16x128xf32, #tpu.memory_space<vmem>>, %arg3: memref<16x128xf32, #tpu.memory_space<vmem>>, %arg4: memref<1x2xf32, #tpu.memory_space<smem>>, %arg5: memref<1x128xf32, #tpu.memory_space<vmem>>, %arg6: memref<1x128xf32, #tpu.memory_space<vmem>>) attributes {dimension_semantics = [#tpu.dimension_semantics<arbitrary>, #tpu.dimension_semantics<arbitrary>], iteration_bounds = array<i64: 1, 1>, scalar_prefetch = 0 : i64, scratch_operands = 2 : i64, tpu.core_type = #tpu.core_type<tc>, window_params = [{transform_indices = @transform_0, window_bounds = array<i64: 16, 128>}, {transform_indices = @transform_1, window_bounds = array<i64: 16, 128>}, {transform_indices = @transform_2, window_bounds = array<i64: 1, 2>}]} {
    %c0_i32 = arith.constant 0 : i32
    %0 = arith.cmpi eq, %arg1, %c0_i32 : i32
    %1 = arith.extui %0 : i1 to i32
    %c0_i32_0 = arith.constant 0 : i32
    %2 = arith.cmpi ne, %1, %c0_i32_0 : i32
    scf.if %2 {
      %cst_12 = arith.constant 0.000000e+00 : f32
      %25 = vector.broadcast %cst_12 : f32 to vector<1x128xf32>
      %c0_13 = arith.constant 0 : index
      %c0_14 = arith.constant 0 : index
      %26 = vector.load %arg5[%c0_13, %c0_14] : memref<1x128xf32, #tpu.memory_space<vmem>>, vector<1x128xf32>
      tpu.vector_store %arg5[%c0_13, %c0_14], %25 {strides = array<i32>} : memref<1x128xf32, #tpu.memory_space<vmem>>, vector<1x128xf32>,
      %cst_15 = arith.constant 0.000000e+00 : f32
      %27 = vector.broadcast %cst_15 : f32 to vector<1x128xf32>
      %c0_16 = arith.constant 0 : index
      %c0_17 = arith.constant 0 : index
      %28 = vector.load %arg6[%c0_16, %c0_17] : memref<1x128xf32, #tpu.memory_space<vmem>>, vector<1x128xf32>
      tpu.vector_store %arg6[%c0_16, %c0_17], %27 {strides = array<i32>} : memref<1x128xf32, #tpu.memory_space<vmem>>, vector<1x128xf32>,
    } else {
    }
    %c1_i32 = arith.constant 1 : i32
    %3 = arith.muli %arg0, %c1_i32 : i32
    %4 = arith.addi %3, %arg1 : i32
    %c16_i32 = arith.constant 16 : i32
    %5 = arith.muli %4, %c16_i32 : i32
    %c0 = arith.constant 0 : index
    %c0_1 = arith.constant 0 : index
    %6 = vector.load %arg2[%c0, %c0_1] : memref<16x128xf32, #tpu.memory_space<vmem>>, vector<16x128xf32>
    %c0_2 = arith.constant 0 : index
    %c0_3 = arith.constant 0 : index
    %7 = vector.load %arg3[%c0_2, %c0_3] : memref<16x128xf32, #tpu.memory_space<vmem>>, vector<16x128xf32>
    %cst = arith.constant 5.000000e-01 : f32
    %8 = vector.broadcast %cst : f32 to vector<16x128xf32>
    %9 = arith.mulf %8, %6 : vector<16x128xf32>
    %10 = math.tanh %9 : vector<16x128xf32>
    %cst_4 = arith.constant 1.000000e+00 : f32
    %11 = vector.broadcast %cst_4 : f32 to vector<16x128xf32>
    %12 = arith.addf %10, %11 : vector<16x128xf32>
    %cst_5 = arith.constant 5.000000e-01 : f32
    %13 = vector.broadcast %cst_5 : f32 to vector<16x128xf32>
    %14 = arith.mulf %13, %12 : vector<16x128xf32>
    %c16_i32_6 = arith.constant 16 : i32
    %15 = arith.addi %5, %c16_i32_6 : i32
    %c16_i32_7 = arith.constant 16 : i32
    %16 = arith.cmpi sle, %15, %c16_i32_7 : i32
    %17 = arith.extui %16 : i1 to i32
    %c0_i32_8 = arith.constant 0 : i32
    %18 = arith.cmpi ne, %17, %c0_i32_8 : i32
    scf.if %18 {
      %c0_12 = arith.constant 0 : index
      %c0_13 = arith.constant 0 : index
      %25 = vector.load %arg5[%c0_12, %c0_13] : memref<1x128xf32, #tpu.memory_space<vmem>>, vector<1x128xf32>
      %26 = arith.mulf %14, %7 : vector<16x128xf32>
      %cst_14 = arith.constant dense<0.000000e+00> : vector<128xf32>
      %27 = vector.multi_reduction <add>, %26, %cst_14 [0] : vector<16x128xf32> to vector<128xf32>
      %28 = vector.shape_cast %27 : vector<128xf32> to vector<1x128xf32>
      %29 = arith.addf %25, %28 : vector<1x128xf32>
      %c0_15 = arith.constant 0 : index
      %c0_16 = arith.constant 0 : index
      %30 = vector.load %arg5[%c0_15, %c0_16] : memref<1x128xf32, #tpu.memory_space<vmem>>, vector<1x128xf32>
      tpu.vector_store %arg5[%c0_15, %c0_16], %29 {strides = array<i32>} : memref<1x128xf32, #tpu.memory_space<vmem>>, vector<1x128xf32>,
      %c0_17 = arith.constant 0 : index
      %c0_18 = arith.constant 0 : index
      %31 = vector.load %arg6[%c0_17, %c0_18] : memref<1x128xf32, #tpu.memory_space<vmem>>, vector<1x128xf32>
      %32 = arith.addf %14, %7 : vector<16x128xf32>
      %cst_19 = arith.constant dense<0.000000e+00> : vector<128xf32>
      %33 = vector.multi_reduction <add>, %32, %cst_19 [0] : vector<16x128xf32> to vector<128xf32>
      %34 = vector.shape_cast %33 : vector<128xf32> to vector<1x128xf32>
      %35 = arith.addf %31, %34 : vector<1x128xf32>
      %c0_20 = arith.constant 0 : index
      %c0_21 = arith.constant 0 : index
      %36 = vector.load %arg6[%c0_20, %c0_21] : memref<1x128xf32, #tpu.memory_space<vmem>>, vector<1x128xf32>
      tpu.vector_store %arg6[%c0_20, %c0_21], %35 {strides = array<i32>} : memref<1x128xf32, #tpu.memory_space<vmem>>, vector<1x128xf32>,
    } else {
    }
    %true = arith.constant true
    %19 = arith.xori %16, %true : i1
    %20 = arith.extui %19 : i1 to i32
    %c0_i32_9 = arith.constant 0 : i32
    %21 = arith.cmpi ne, %20, %c0_i32_9 : i32
    scf.if %21 {
      %25 = tpu.iota {dimensions = array<i32: 0>} : vector<16x1xi32>
      %26 = vector.broadcast %5 : i32 to vector<16x1xi32>
      %27 = arith.addi %26, %25 : vector<16x1xi32>
      %c16_i32_12 = arith.constant 16 : i32
      %28 = vector.broadcast %c16_i32_12 : i32 to vector<16x1xi32>
      %29 = arith.cmpi slt, %27, %28 : vector<16x1xi32>
      %cst_13 = arith.constant 0.000000e+00 : f32
      %30 = vector.shape_cast %29 : vector<16x1xi1> to vector<16x1xi1>
      %31 = vector.broadcast %30 : vector<16x1xi1> to vector<16x128xi1>
      %32 = vector.broadcast %cst_13 : f32 to vector<16x128xf32>
      %33 = arith.select %31, %14, %32 : vector<16x128xi1>, vector<16x128xf32>
      %cst_14 = arith.constant 0.000000e+00 : f32
      %34 = vector.shape_cast %29 : vector<16x1xi1> to vector<16x1xi1>
      %35 = vector.broadcast %34 : vector<16x1xi1> to vector<16x128xi1>
      %36 = vector.broadcast %cst_14 : f32 to vector<16x128xf32>
      %37 = arith.select %35, %7, %36 : vector<16x128xi1>, vector<16x128xf32>
      %c0_15 = arith.constant 0 : index
      %c0_16 = arith.constant 0 : index
      %38 = vector.load %arg5[%c0_15, %c0_16] : memref<1x128xf32, #tpu.memory_space<vmem>>, vector<1x128xf32>
      %39 = arith.mulf %33, %37 : vector<16x128xf32>
      %cst_17 = arith.constant dense<0.000000e+00> : vector<128xf32>
      %40 = vector.multi_reduction <add>, %39, %cst_17 [0] : vector<16x128xf32> to vector<128xf32>
      %41 = vector.shape_cast %40 : vector<128xf32> to vector<1x128xf32>
      %42 = arith.addf %38, %41 : vector<1x128xf32>
      %c0_18 = arith.constant 0 : index
      %c0_19 = arith.constant 0 : index
      %43 = vector.load %arg5[%c0_18, %c0_19] : memref<1x128xf32, #tpu.memory_space<vmem>>, vector<1x128xf32>
      tpu.vector_store %arg5[%c0_18, %c0_19], %42 {strides = array<i32>} : memref<1x128xf32, #tpu.memory_space<vmem>>, vector<1x128xf32>,
      %c0_20 = arith.constant 0 : index
      %c0_21 = arith.constant 0 : index
      %44 = vector.load %arg6[%c0_20, %c0_21] : memref<1x128xf32, #tpu.memory_space<vmem>>, vector<1x128xf32>
      %45 = arith.addf %33, %37 : vector<16x128xf32>
      %cst_22 = arith.constant dense<0.000000e+00> : vector<128xf32>
      %46 = vector.multi_reduction <add>, %45, %cst_22 [0] : vector<16x128xf32> to vector<128xf32>
      %47 = vector.shape_cast %46 : vector<128xf32> to vector<1x128xf32>
      %48 = arith.addf %44, %47 : vector<1x128xf32>
      %c0_23 = arith.constant 0 : index
      %c0_24 = arith.constant 0 : index
      %49 = vector.load %arg6[%c0_23, %c0_24] : memref<1x128xf32, #tpu.memory_space<vmem>>, vector<1x128xf32>
      tpu.vector_store %arg6[%c0_23, %c0_24], %48 {strides = array<i32>} : memref<1x128xf32, #tpu.memory_space<vmem>>, vector<1x128xf32>,
    } else {
    }
    %c0_i32_10 = arith.constant 0 : i32
    %22 = arith.cmpi eq, %arg1, %c0_i32_10 : i32
    %23 = arith.extui %22 : i1 to i32
    %c0_i32_11 = arith.constant 0 : i32
    %24 = arith.cmpi ne, %23, %c0_i32_11 : i32
    scf.if %24 {
      %c0_12 = arith.constant 0 : index
      %c0_13 = arith.constant 0 : index
      %25 = vector.load %arg5[%c0_12, %c0_13] : memref<1x128xf32, #tpu.memory_space<vmem>>, vector<1x128xf32>
      %26 = vector.shape_cast %25 : vector<1x128xf32> to vector<1x1x128xf32>
      %cst_14 = arith.constant dense<0.000000e+00> : vector<1xf32>
      %27 = vector.multi_reduction <add>, %26, %cst_14 [1, 2] : vector<1x1x128xf32> to vector<1xf32>
      %28 = vector.shape_cast %27 : vector<1xf32> to vector<1x1x1xf32>
      %29 = vector.extract %28[0, 0, 0] : f32 from vector<1x1x1xf32>
      %c0_15 = arith.constant 0 : index
      %c0_16 = arith.constant 0 : index
      %30 = memref.load %arg4[%c0_15, %c0_16] : memref<1x2xf32, #tpu.memory_space<smem>>
      memref.store %29, %arg4[%c0_15, %c0_16] : memref<1x2xf32, #tpu.memory_space<smem>>
      %c0_17 = arith.constant 0 : index
      %c0_18 = arith.constant 0 : index
      %31 = vector.load %arg6[%c0_17, %c0_18] : memref<1x128xf32, #tpu.memory_space<vmem>>, vector<1x128xf32>
      %32 = vector.shape_cast %31 : vector<1x128xf32> to vector<1x1x128xf32>
      %cst_19 = arith.constant dense<0.000000e+00> : vector<1xf32>
      %33 = vector.multi_reduction <add>, %32, %cst_19 [1, 2] : vector<1x1x128xf32> to vector<1xf32>
      %34 = vector.shape_cast %33 : vector<1xf32> to vector<1x1x1xf32>
      %35 = vector.extract %34[0, 0, 0] : f32 from vector<1x1x1xf32>
      %c0_20 = arith.constant 0 : index
      %c1 = arith.constant 1 : index
      %36 = memref.load %arg4[%c0_20, %c1] : memref<1x2xf32, #tpu.memory_space<smem>>
      memref.store %35, %arg4[%c0_20, %c1] : memref<1x2xf32, #tpu.memory_space<smem>>
    } else {
    }
    return
  }
  func.func @transform_0(%arg0: i32, %arg1: i32) -> (i32, i32) {
    %c1_i32 = arith.constant 1 : i32
    %0 = arith.muli %arg0, %c1_i32 : i32
    %1 = arith.addi %0, %arg1 : i32
    %c0_i32 = arith.constant 0 : i32
    %2 = arith.minsi %1, %c0_i32 : i32
    %c0_i32_0 = arith.constant 0 : i32
    %c0_i32_1 = arith.constant 0 : i32
    return %2, %c0_i32_0 : i32, i32
  }
  func.func @transform_1(%arg0: i32, %arg1: i32) -> (i32, i32) {
    %c1_i32 = arith.constant 1 : i32
    %0 = arith.muli %arg0, %c1_i32 : i32
    %1 = arith.addi %0, %arg1 : i32
    %c0_i32 = arith.constant 0 : i32
    %2 = arith.minsi %1, %c0_i32 : i32
    %c0_i32_0 = arith.constant 0 : i32
    %c0_i32_1 = arith.constant 0 : i32
    return %2, %c0_i32_0 : i32, i32
  }
  func.func @transform_2(%arg0: i32, %arg1: i32) -> (i32, i32) {
    %c0_i32 = arith.constant 0 : i32
    %c0_i32_0 = arith.constant 0 : i32
    return %arg0, %c0_i32 : i32, i32
  }
}

</mosaic_0001>

<llo_original>
// kernel: tpu_custom_call.1
$region0: #{tpu_custom_call.1}
  #allocation0 [shape = 'u32[]', space=smem, size = 0x4, offset = 0x4, fixed_abs, tag = 'smem constant byte address 0x4 - core index']
  #allocation1 [shape = 'u32[72,128]{1,0:T(1,128)}', space=vmem, size = 0x9000, scoped, tag = 'internal scratch']
  #allocation2 [shape = 'f32[1,128]{1,0:T(1,128)}', space=vmem, size = 0x200, scoped, tag = 'scratch operand']
  #allocation3 [shape = 'f32[1,128]{1,0:T(1,128)}', space=vmem, size = 0x200, scoped, tag = 'scratch operand']
  %s0 = inlined_call_operand.hbm [shape: f32[16,128], index: 0, kind: input, shape index: {}]
  %s1 = inlined_call_operand.hbm [shape: f32[16,128], index: 1, kind: input, shape index: {}]
  %s2 = inlined_call_operand.hbm [shape: f32[1,2], index: 2, kind: output, shape index: {}]
  %s3 = sld [smem:[#allocation0]]
  $region42: #{tpu_custom_call.1} parent=0
    _
  %s5 = ssub.s32 1, %s3
  %s6 = scalar_select 0, %s5, %s3
  $region1: #{tpu_custom_call.1} parent=0
    #allocation4 [shape = 'u8[8192]{0}', space=vmem, size = 0x2000, scoped, tag = 'input window, operand 0, single buffered']
    #allocation5 [shape = 's32[1]{0}', space=sflag, size = 0x4, scoped, tag = 'scoped memory for tpu_custom_call.1']
    #allocation6 [shape = 's32[1]{0}', space=sflag, size = 0x4, scoped, tag = 'scoped memory for tpu_custom_call.1']
    #allocation7 [shape = 'u8[8192]{0}', space=vmem, size = 0x2000, scoped, tag = 'input window, operand 1, single buffered']
    #allocation8 [shape = 's32[1]{0}', space=sflag, size = 0x4, scoped, tag = 'scoped memory for tpu_custom_call.1']
    #allocation9 [shape = 'u8[512]{0}', space=smem, size = 0x200, scoped, tag = 'output window, operand 0, single buffered']
    %7 = vsyncpa [#allocation5], 0
    %8 = vsyncpa [#allocation8], 0
    %9 = vsyncpa [#allocation6], 0
    // Predicated region
    $region2: #{tpu_custom_call.1} parent=1 // pred_check
      _
    $region3: #{tpu_custom_call.1} parent=1 // pred_check_branch
      %11 = sbr.rel (0) target = $region5
    $region4: #{tpu_custom_call.1} parent=1 // pred_region
      %s12 = sadd.s32 0, 0
      %p13 = scmp.lt.s32.totalorder %s12, 0
      %s14 = scalar_select %p13, %s12, 0
      %s15 = smul.u32 2, %s14
      %17 = vsyncadd [#allocation5], 0
      %s18 = smul.addr %s15, 8
      %s19 = scalar_lea.hbm %s0, %s18
      %s20 = sshll.u32 %s19, 4
      %s21 = int_to_ptr.hbm [resolvable:$true] %s20
      %s22 = sshll.u32 [#allocation4], 4
      %s23 = int_to_ptr.vmem [resolvable:$true] %s22
      %28 = dma.hbm_to_vmem [thread:$0]  %s21, 256, %s23, [#allocation5], 128, 128, 8
    $region5: #{tpu_custom_call.1} parent=1 // pred_fallthru
      _
    // Predicated region
    $region6: #{tpu_custom_call.1} parent=1 // pred_check
      _
    $region7: #{tpu_custom_call.1} parent=1 // pred_check_branch
      %30 = sbr.rel (0) target = $region9
    $region8: #{tpu_custom_call.1} parent=1 // pred_region
      %s31 = sadd.s32 0, 0
      %p32 = scmp.lt.s32.totalorder %s31, 0
      %s33 = scalar_select %p32, %s31, 0
      %s34 = smul.u32 2, %s33
      %36 = vsyncadd [#allocation8], 0
      %s37 = smul.addr %s34, 8
      %s38 = scalar_lea.hbm %s1, %s37
      %s39 = sshll.u32 %s38, 4
      %s40 = int_to_ptr.hbm [resolvable:$true] %s39
      %s41 = sshll.u32 [#allocation7], 4
      %s42 = int_to_ptr.vmem [resolvable:$true] %s41
      %47 = dma.hbm_to_vmem [thread:$0]  %s40, 256, %s42, [#allocation8], 128, 128, 8
    $region9: #{tpu_custom_call.1} parent=1 // pred_fallthru
      _
    // Predicated region
    $region10: #{tpu_custom_call.1} parent=1 // pred_check
      _
    $region11: #{tpu_custom_call.1} parent=1 // pred_check_branch
      %49 = sbr.rel (0) target = $region13
    $region12: #{tpu_custom_call.1} parent=1 // pred_region
      %51 = dma.done [#allocation5], 256
    $region13: #{tpu_custom_call.1} parent=1 // pred_fallthru
      _
    // Predicated region
    $region14: #{tpu_custom_call.1} parent=1 // pred_check
      _
    $region15: #{tpu_custom_call.1} parent=1 // pred_check_branch
      %53 = sbr.rel (0) target = $region17
    $region16: #{tpu_custom_call.1} parent=1 // pred_region
      %55 = dma.done [#allocation8], 256
    $region17: #{tpu_custom_call.1} parent=1 // pred_fallthru
      _
    %s56 = sadd.s32 0, 0
    %p57 = scmp.lt.s32.totalorder %s56, 0
    %s58 = scalar_select %p57, %s56, 0
    %s59 = smul.u32 2, %s58
    %s60 = sadd.s32 0, 0
    %p61 = scmp.lt.s32.totalorder %s60, 0
    %s62 = scalar_select %p61, %s60, 0
    %s63 = smul.u32 2, %s62
    %p64 = scmp.eq.s32.totalorder 0, 0
    // Predicated region
    $region18: #{tpu_custom_call.1} parent=1 // pred_check
      %p65 = pneg %p64
    $region19: #{tpu_custom_call.1} parent=1 // pred_check_branch
      %67 = sbr.rel (%p65) target = $region21
    $region20: #{tpu_custom_call.1} parent=1 // pred_region
      %68 = vst [vmem:[#allocation2] sm:$0x1] 0.0
      %69 = vst [vmem:[#allocation3] sm:$0x1] 0.0
    $region21: #{tpu_custom_call.1} parent=1 // pred_fallthru
      _
    %s70 = sadd.s32 0, 0
    %s71 = smul.u32 %s70, 16
    %v72 = vld [vmem:[#allocation4] sm:$0xff]
    %v73 = vld [vmem:[#allocation4 + $0x8] sm:$0xff]
    %v74 = vld [vmem:[#allocation7] sm:$0xff]
    %v75 = vld [vmem:[#allocation7 + $0x8] sm:$0xff]
    %v76 = vmul.f32 %v72, 0.5
    %v77 = vmul.f32 %v73, 0.5
    %v78 = vtanh.pop %v76
    %v79 = vtanh.pop %v77
    %v80 = vadd.f32 %v78, 1.0
    %v81 = vadd.f32 %v79, 1.0
    %v82 = vmul.f32 %v80, 0.5
    %v83 = vmul.f32 %v81, 0.5
    %s84 = sadd.s32 %s71, 16
    %p85 = scmp.le.s32.totalorder %s84, 16
    // Predicated region
    $region22: #{tpu_custom_call.1} parent=1 // pred_check
      %p86 = pneg %p85
    $region23: #{tpu_custom_call.1} parent=1 // pred_check_branch
      %88 = sbr.rel (%p86) target = $region25
    $region24: #{tpu_custom_call.1} parent=1 // pred_region
      %v89 = vld [vmem:[#allocation2] sm:$0x1]
      %v90 = vmul.f32 %v82, %v74
      %v91 = vmul.f32 %v83, %v75
      %v92 = vadd.f32 %v90, %v91
      %v93 = vrot.slane %v92, 4
      %v94 = vadd.f32 %v92, %v93
      %v95 = vrot.slane %v94, 2
      %v96 = vadd.f32 %v94, %v95
      %v97 = vrot.slane %v96, 1
      %v98 = vadd.f32 %v96, %v97
      %v99 = vadd.f32 %v89, %v98
      %100 = vst [vmem:[#allocation2] sm:$0x1] %v99
      %v101 = vld [vmem:[#allocation3] sm:$0x1]
      %v102 = vadd.f32 %v82, %v74
      %v103 = vadd.f32 %v83, %v75
      %v104 = vadd.f32 %v102, %v103
      %v105 = vrot.slane %v104, 4
      %v106 = vadd.f32 %v104, %v105
      %v107 = vrot.slane %v106, 2
      %v108 = vadd.f32 %v106, %v107
      %v109 = vrot.slane %v108, 1
      %v110 = vadd.f32 %v108, %v109
      %v111 = vadd.f32 %v101, %v110
      %112 = vst [vmem:[#allocation3] sm:$0x1] %v111
    $region25: #{tpu_custom_call.1} parent=1 // pred_fallthru
      _
    %p113 = scmp.gt.s32.totalorder %s84, 16
    // Predicated region
    $region26: #{tpu_custom_call.1} parent=1 // pred_check
      %p114 = pneg %p113
    $region27: #{tpu_custom_call.1} parent=1 // pred_check_branch
      %116 = sbr.rel (%p114) target = $region29
    $region28: #{tpu_custom_call.1} parent=1 // pred_region
      %v117 = vlaneseq
      %v118 = vshrl.u32 %v117, 7
      %v119 = vadd.s32 %v118, 8
      %v120 = vstv %s71
      %v121 = vadd.s32 %v120, %v118
      %v122 = vadd.s32 %v120, %v119
      %vm123 = vcmp.lt.s32.totalorder %v121, 16
      %vm124 = vcmp.lt.s32.totalorder %v122, 16
      %v125 = vsel %vm123, 1, 0
      %v126 = vsel %vm124, 1, 0
      %vm127 = vcmp.eq.s32.totalorder %v125, 1
      %vm128 = vcmp.eq.s32.totalorder %v126, 1
      %v129 = vsel %vm127, %v82, 0.0
      %v130 = vsel %vm128, %v83, 0.0
      %v131 = vsel %vm127, %v74, 0.0
      %v132 = vsel %vm128, %v75, 0.0
      %v133 = vld [vmem:[#allocation2] sm:$0x1]
      %v134 = vmul.f32 %v129, %v131
      %v135 = vmul.f32 %v130, %v132
      %v136 = vadd.f32 %v134, %v135
      %v137 = vrot.slane %v136, 4
      %v138 = vadd.f32 %v136, %v137
      %v139 = vrot.slane %v138, 2
      %v140 = vadd.f32 %v138, %v139
      %v141 = vrot.slane %v140, 1
      %v142 = vadd.f32 %v140, %v141
      %v143 = vadd.f32 %v133, %v142
      %144 = vst [vmem:[#allocation2] sm:$0x1] %v143
      %v145 = vld [vmem:[#allocation3] sm:$0x1]
      %v146 = vadd.f32 %v129, %v131
      %v147 = vadd.f32 %v130, %v132
      %v148 = vadd.f32 %v146, %v147
      %v149 = vrot.slane %v148, 4
      %v150 = vadd.f32 %v148, %v149
      %v151 = vrot.slane %v150, 2
      %v152 = vadd.f32 %v150, %v151
      %v153 = vrot.slane %v152, 1
      %v154 = vadd.f32 %v152, %v153
      %v155 = vadd.f32 %v145, %v154
      %156 = vst [vmem:[#allocation3] sm:$0x1] %v155
    $region29: #{tpu_custom_call.1} parent=1 // pred_fallthru
      _
    // Predicated region
    $region30: #{tpu_custom_call.1} parent=1 // pred_check
      %p157 = pneg %p64
    $region31: #{tpu_custom_call.1} parent=1 // pred_check_branch
      %159 = sbr.rel (%p157) target = $region33
    $region32: #{tpu_custom_call.1} parent=1 // pred_region
      %v160 = vld [vmem:[#allocation2] sm:$0x1]
      %vm161 = vcmask 1040384
      %v162 = vsel %vm161, %v160, 0.0
      %163 = vadd.xlane.f32.xlu0 %v162
      %v164 = vpop.xlane.xlu0 %163
      %v165 = vrot.slane %v164, 4
      %v166 = vadd.f32 %v164, %v165
      %v167 = vrot.slane %v166, 2
      %v168 = vadd.f32 %v166, %v167
      %v169 = vrot.slane %v168, 1
      %v170 = vadd.f32 %v168, %v169
      %s171 = vtos %v170
      %s172 = scalar_lea.smem [#allocation9], 0
      %173 = sst [smem:[%s172]] %s171
      %v174 = vld [vmem:[#allocation3] sm:$0x1]
      %v175 = vsel %vm161, %v174, 0.0
      %176 = vadd.xlane.f32.xlu0 %v175
      %v177 = vpop.xlane.xlu0 %176
      %v178 = vrot.slane %v177, 4
      %v179 = vadd.f32 %v177, %v178
      %v180 = vrot.slane %v179, 2
      %v181 = vadd.f32 %v179, %v180
      %v182 = vrot.slane %v181, 1
      %v183 = vadd.f32 %v181, %v182
      %s184 = vtos %v183
      %s185 = scalar_lea.smem [#allocation9], 1
      %186 = sst [smem:[%s185]] %s184
    $region33: #{tpu_custom_call.1} parent=1 // pred_fallthru
      _
    // Predicated region
    $region34: #{tpu_custom_call.1} parent=1 // pred_check
      _
    $region35: #{tpu_custom_call.1} parent=1 // pred_check_branch
      %188 = sbr.rel (0) target = $region37
    $region36: #{tpu_custom_call.1} parent=1 // pred_region
      %190 = vsyncadd [#allocation6], 0
      %s192 = sshll.u32 %s2, 4
      %s193 = int_to_ptr.hbm [resolvable:$true] %s192
      %195 = dma.smem_to_hbm [#allocation9], 16, %s193, [#allocation6]
    $region37: #{tpu_custom_call.1} parent=1 // pred_fallthru
      _
    // Predicated region
    $region38: #{tpu_custom_call.1} parent=1 // pred_check
      _
    $region39: #{tpu_custom_call.1} parent=1 // pred_check_branch
      %197 = sbr.rel (0) target = $region41
    $region40: #{tpu_custom_call.1} parent=1 // pred_region
      %199 = dma.done [#allocation6], 16
    $region41: #{tpu_custom_call.1} parent=1 // pred_fallthru
      _
    %200 = sfence
    %201 = vsyncpa [#allocation5], 1
    %202 = vsyncpa [#allocation8], 1
    %203 = vsyncpa [#allocation6], 1

</llo_original>
